<compile_context>
chip_gen: v6e
topology: v6e:2x2x1
jax: 0.10.0
libtpu: 0.0.40
codegen_flags: <defaults>
</compile_context>

<pallas_src>
import functools

import jax
import jax.numpy as jnp
import numpy as np
from jax.experimental import pallas as pl
from jax.experimental.pallas import tpu as pltpu


def _ntxent_kernel(z1_ref, z2_ref, loss_ref, m_sc, l_sc, pos_sc, *,
                   inv_temperature, eps):
    i = pl.program_id(0)          # row tile (parallel)
    j = pl.program_id(1)          # column tile (reduction)

    @pl.when(j == 0)
    def _():
        m_sc[...] = jnp.full_like(m_sc, -jnp.inf)
        l_sc[...] = jnp.zeros_like(l_sc)
        pos_sc[...] = jnp.zeros_like(pos_sc)

    # Upcast in-kernel (supports bf16 inputs without an extra HBM convert pass;
    # also keeps v5e's f32-only VPU/EUP happy).
    x1 = z1_ref[...].astype(jnp.float32)            # (T, D)
    x2 = z2_ref[...].astype(jnp.float32)            # (T, D)

    # Row-wise L2 normalization, matching F.normalize's eps clamp.
    n1 = x1 / jnp.maximum(jnp.sqrt(jnp.sum(x1 * x1, axis=-1, keepdims=True)), eps)
    n2 = x2 / jnp.maximum(jnp.sqrt(jnp.sum(x2 * x2, axis=-1, keepdims=True)), eps)

    # Similarity tile on the MXU, scaled by 1/temperature.
    s = jnp.dot(n1, n2.T, preferred_element_type=jnp.float32) * inv_temperature  # (T, T)

    # Online logsumexp across column tiles.
    m_prev = m_sc[...]
    m_new = jnp.maximum(m_prev, jnp.max(s, axis=-1, keepdims=True))
    l_sc[...] = (l_sc[...] * jnp.exp(m_prev - m_new)
                 + jnp.sum(jnp.exp(s - m_new), axis=-1, keepdims=True))
    m_sc[...] = m_new

    # The positive (diagonal) logits live in the tile where i == j.
    @pl.when(i == j)
    def _():
        r = jax.lax.broadcasted_iota(jnp.int32, s.shape, 0)
        c = jax.lax.broadcasted_iota(jnp.int32, s.shape, 1)
        pos_sc[...] = jnp.sum(jnp.where(r == c, s, 0.0), axis=-1, keepdims=True)

    # Final writeback: per-row loss = logsumexp - positive.
    @pl.when(j == pl.num_programs(1) - 1)
    def _():
        loss_ref[...] = m_sc[...] + jnp.log(l_sc[...]) - pos_sc[...]   # (T, 1)


def ntxent_loss(logits_1, logits_2, temperature=0.1, *, block_rows=128):
    """logits_1, logits_2: (B, D). Returns scalar NT-Xent loss."""
    B, D = logits_1.shape
    T = min(block_rows, B)
    # TODO(synk): ragged batch (B not a multiple of the row tile) not handled.
    assert B % T == 0, "batch size must be a multiple of the row tile"

    kernel = functools.partial(_ntxent_kernel,
                               inv_temperature=1.0 / float(temperature),
                               eps=1e-12)

    per_row = pl.pallas_call(
        kernel,
        grid=(B // T, B // T),
        in_specs=[
            pl.BlockSpec((T, D), lambda i, j: (i, 0)),   # z1 row tile
            pl.BlockSpec((T, D), lambda i, j: (j, 0)),   # z2 column tile
        ],
        out_specs=pl.BlockSpec((T, 1), lambda i, j: (i, 0)),
        out_shape=jax.ShapeDtypeStruct((B, 1), jnp.float32),
        scratch_shapes=[
            pltpu.VMEM((T, 1), jnp.float32),   # running max
            pltpu.VMEM((T, 1), jnp.float32),   # running sum of exp
            pltpu.VMEM((T, 1), jnp.float32),   # positive (diagonal) logit
        ],
        compiler_params=pltpu.CompilerParams(
            dimension_semantics=("parallel", "arbitrary")),
    )(logits_1, logits_2)

    # Tiny (B,) epilogue: mean over per-row cross-entropy losses.
    return jnp.mean(per_row[:, 0])


def ntxent_loss_ref(logits_1, logits_2, temperature=0.1):
    """Pure-JAX reference mirroring the PyTorch module step by step."""
    B = logits_1.shape[0]
    eps = 1e-12
    z1 = logits_1.astype(jnp.float32)
    z2 = logits_2.astype(jnp.float32)
    n1 = z1 / jnp.maximum(jnp.linalg.norm(z1, axis=1, keepdims=True), eps)
    n2 = z2 / jnp.maximum(jnp.linalg.norm(z2, axis=1, keepdims=True), eps)
    logits = jnp.matmul(n1, n2.T) / temperature
    pos = jnp.diagonal(logits)
    # off-diagonal entries per row, row-major (same as logits[~eye].view(B, B-1))
    neg_cols = np.stack([np.delete(np.arange(B), r) for r in range(B)])   # (B, B-1)
    neg = jnp.take_along_axis(logits, jnp.asarray(neg_cols), axis=1)
    full = jnp.concatenate([pos[:, None], neg], axis=1)                   # (B, B)
    # F.cross_entropy with labels == 0  ==  logsumexp(row) - row[0]
    return jnp.mean(jax.scipy.special.logsumexp(full, axis=1) - full[:, 0])


if __name__ == "__main__":
    B, D = 8, 32
    temperature = 0.1

    key = jax.random.PRNGKey(0)
    k1, k2 = jax.random.split(key)
    z1 = jax.random.normal(k1, (B, D), dtype=jnp.float32)
    z2 = jax.random.normal(k2, (B, D), dtype=jnp.float32)

    loss = jax.block_until_ready(ntxent_loss(z1, z2, temperature))
    ref = jax.block_until_ready(ntxent_loss_ref(z1, z2, temperature))

    np.testing.assert_allclose(np.asarray(loss), np.asarray(ref), rtol=1e-5, atol=1e-5)
    print("KERNEL_OK")
</pallas_src>

<mosaic_0001>
module attributes {stable_mosaic.version = 11 : i64} {
  func.func @_ntxent_kernel(%arg0: i32, %arg1: i32, %arg2: memref<8x32xf32, #tpu.memory_space<vmem>>, %arg3: memref<8x32xf32, #tpu.memory_space<vmem>>, %arg4: memref<8x1xf32, #tpu.memory_space<vmem>>, %arg5: memref<8x1xf32, #tpu.memory_space<vmem>>, %arg6: memref<8x1xf32, #tpu.memory_space<vmem>>, %arg7: memref<8x1xf32, #tpu.memory_space<vmem>>) attributes {dimension_semantics = [#tpu.dimension_semantics<parallel>, #tpu.dimension_semantics<arbitrary>], iteration_bounds = array<i64: 1, 1>, scalar_prefetch = 0 : i64, scratch_operands = 3 : i64, tpu.core_type = #tpu.core_type<tc>, window_params = [{transform_indices = @transform_0, window_bounds = array<i64: 8, 32>}, {transform_indices = @transform_1, window_bounds = array<i64: 8, 32>}, {transform_indices = @transform_2, window_bounds = array<i64: 8, 1>}]} {
    %c0_i32 = arith.constant 0 : i32
    %0 = arith.cmpi eq, %arg1, %c0_i32 : i32
    %1 = arith.extui %0 : i1 to i32
    %c0_i32_0 = arith.constant 0 : i32
    %2 = arith.cmpi ne, %1, %c0_i32_0 : i32
    scf.if %2 {
      %cst_22 = arith.constant 0xFF800000 : f32
      %47 = vector.broadcast %cst_22 : f32 to vector<8x1xf32>
      %c0_23 = arith.constant 0 : index
      %c0_24 = arith.constant 0 : index
      %48 = vector.load %arg5[%c0_23, %c0_24] : memref<8x1xf32, #tpu.memory_space<vmem>>, vector<8x1xf32>
      tpu.vector_store %arg5[%c0_23, %c0_24], %47 {strides = array<i32>} : memref<8x1xf32, #tpu.memory_space<vmem>>, vector<8x1xf32>,
      %cst_25 = arith.constant 0.000000e+00 : f32
      %49 = vector.broadcast %cst_25 : f32 to vector<8x1xf32>
      %c0_26 = arith.constant 0 : index
      %c0_27 = arith.constant 0 : index
      %50 = vector.load %arg6[%c0_26, %c0_27] : memref<8x1xf32, #tpu.memory_space<vmem>>, vector<8x1xf32>
      tpu.vector_store %arg6[%c0_26, %c0_27], %49 {strides = array<i32>} : memref<8x1xf32, #tpu.memory_space<vmem>>, vector<8x1xf32>,
      %cst_28 = arith.constant 0.000000e+00 : f32
      %51 = vector.broadcast %cst_28 : f32 to vector<8x1xf32>
      %c0_29 = arith.constant 0 : index
      %c0_30 = arith.constant 0 : index
      %52 = vector.load %arg7[%c0_29, %c0_30] : memref<8x1xf32, #tpu.memory_space<vmem>>, vector<8x1xf32>
      tpu.vector_store %arg7[%c0_29, %c0_30], %51 {strides = array<i32>} : memref<8x1xf32, #tpu.memory_space<vmem>>, vector<8x1xf32>,
    } else {
    }
    %c0 = arith.constant 0 : index
    %c0_1 = arith.constant 0 : index
    %3 = vector.load %arg2[%c0, %c0_1] : memref<8x32xf32, #tpu.memory_space<vmem>>, vector<8x32xf32>
    %c0_2 = arith.constant 0 : index
    %c0_3 = arith.constant 0 : index
    %4 = vector.load %arg3[%c0_2, %c0_3] : memref<8x32xf32, #tpu.memory_space<vmem>>, vector<8x32xf32>
    %5 = arith.mulf %3, %3 : vector<8x32xf32>
    %cst = arith.constant dense<0.000000e+00> : vector<8xf32>
    %6 = vector.multi_reduction <add>, %5, %cst [1] : vector<8x32xf32> to vector<8xf32>
    %7 = vector.shape_cast %6 : vector<8xf32> to vector<8x1xf32>
    %8 = math.sqrt %7 : vector<8x1xf32>
    %cst_4 = arith.constant 9.99999996E-13 : f32
    %9 = vector.broadcast %cst_4 : f32 to vector<8x1xf32>
    %10 = arith.maximumf %8, %9 : vector<8x1xf32>
    %11 = vector.broadcast %10 : vector<8x1xf32> to vector<8x32xf32>
    %12 = arith.divf %3, %11 : vector<8x32xf32>
    %13 = arith.mulf %4, %4 : vector<8x32xf32>
    %cst_5 = arith.constant dense<0.000000e+00> : vector<8xf32>
    %14 = vector.multi_reduction <add>, %13, %cst_5 [1] : vector<8x32xf32> to vector<8xf32>
    %15 = vector.shape_cast %14 : vector<8xf32> to vector<8x1xf32>
    %16 = math.sqrt %15 : vector<8x1xf32>
    %cst_6 = arith.constant 9.99999996E-13 : f32
    %17 = vector.broadcast %cst_6 : f32 to vector<8x1xf32>
    %18 = arith.maximumf %16, %17 : vector<8x1xf32>
    %19 = vector.broadcast %18 : vector<8x1xf32> to vector<8x32xf32>
    %20 = arith.divf %4, %19 : vector<8x32xf32>
    %21 = tpu.transpose %20, [1, 0] : vector<8x32xf32> -> vector<32x8xf32>
    %cst_7 = arith.constant dense<0.000000e+00> : vector<8x8xf32>
    %22 = tpu.matmul %12, %21, %cst_7 {dimension_numbers = #tpu.dot_dimension_numbers<[1], [0], [0], [1], [0, 0, 1, 1], [], []>} : vector<8x32xf32>, vector<32x8xf32>, vector<8x8xf32> -> vector<8x8xf32>
    %cst_8 = arith.constant 1.000000e+01 : f32
    %23 = vector.broadcast %cst_8 : f32 to vector<8x8xf32>
    %24 = arith.mulf %22, %23 : vector<8x8xf32>
    %c0_9 = arith.constant 0 : index
    %c0_10 = arith.constant 0 : index
    %25 = vector.load %arg5[%c0_9, %c0_10] : memref<8x1xf32, #tpu.memory_space<vmem>>, vector<8x1xf32>
    %cst_11 = arith.constant dense<0xFF800000> : vector<8xf32>
    %26 = vector.multi_reduction <maximumf>, %24, %cst_11 [1] : vector<8x8xf32> to vector<8xf32>
    %27 = vector.shape_cast %26 : vector<8xf32> to vector<8x1xf32>
    %28 = arith.maximumf %25, %27 : vector<8x1xf32>
    %c0_12 = arith.constant 0 : index
    %c0_13 = arith.constant 0 : index
    %29 = vector.load %arg6[%c0_12, %c0_13] : memref<8x1xf32, #tpu.memory_space<vmem>>, vector<8x1xf32>
    %30 = arith.subf %25, %28 : vector<8x1xf32>
    %31 = math.exp %30 : vector<8x1xf32>
    %32 = arith.mulf %29, %31 : vector<8x1xf32>
    %33 = vector.broadcast %28 : vector<8x1xf32> to vector<8x8xf32>
    %34 = arith.subf %24, %33 : vector<8x8xf32>
    %35 = math.exp %34 : vector<8x8xf32>
    %cst_14 = arith.constant dense<0.000000e+00> : vector<8xf32>
    %36 = vector.multi_reduction <add>, %35, %cst_14 [1] : vector<8x8xf32> to vector<8xf32>
    %37 = vector.shape_cast %36 : vector<8xf32> to vector<8x1xf32>
    %38 = arith.addf %32, %37 : vector<8x1xf32>
    %c0_15 = arith.constant 0 : index
    %c0_16 = arith.constant 0 : index
    %39 = vector.load %arg6[%c0_15, %c0_16] : memref<8x1xf32, #tpu.memory_space<vmem>>, vector<8x1xf32>
    tpu.vector_store %arg6[%c0_15, %c0_16], %38 {strides = array<i32>} : memref<8x1xf32, #tpu.memory_space<vmem>>, vector<8x1xf32>,
    %c0_17 = arith.constant 0 : index
    %c0_18 = arith.constant 0 : index
    %40 = vector.load %arg5[%c0_17, %c0_18] : memref<8x1xf32, #tpu.memory_space<vmem>>, vector<8x1xf32>
    tpu.vector_store %arg5[%c0_17, %c0_18], %28 {strides = array<i32>} : memref<8x1xf32, #tpu.memory_space<vmem>>, vector<8x1xf32>,
    %41 = arith.cmpi eq, %arg0, %arg1 : i32
    %42 = arith.extui %41 : i1 to i32
    %c0_i32_19 = arith.constant 0 : i32
    %43 = arith.cmpi ne, %42, %c0_i32_19 : i32
    scf.if %43 {
      %47 = tpu.iota {dimensions = array<i32: 0>} : vector<8x8xi32>
      %48 = tpu.iota {dimensions = array<i32: 1>} : vector<8x8xi32>
      %49 = arith.cmpi eq, %47, %48 : vector<8x8xi32>
      %cst_22 = arith.constant 0.000000e+00 : f32
      %50 = vector.broadcast %cst_22 : f32 to vector<8x8xf32>
      %51 = arith.select %49, %24, %50 : vector<8x8xi1>, vector<8x8xf32>
      %cst_23 = arith.constant dense<0.000000e+00> : vector<8xf32>
      %52 = vector.multi_reduction <add>, %51, %cst_23 [1] : vector<8x8xf32> to vector<8xf32>
      %53 = vector.shape_cast %52 : vector<8xf32> to vector<8x1xf32>
      %c0_24 = arith.constant 0 : index
      %c0_25 = arith.constant 0 : index
      %54 = vector.load %arg7[%c0_24, %c0_25] : memref<8x1xf32, #tpu.memory_space<vmem>>, vector<8x1xf32>
      tpu.vector_store %arg7[%c0_24, %c0_25], %53 {strides = array<i32>} : memref<8x1xf32, #tpu.memory_space<vmem>>, vector<8x1xf32>,
    } else {
    }
    %c0_i32_20 = arith.constant 0 : i32
    %44 = arith.cmpi eq, %arg1, %c0_i32_20 : i32
    %45 = arith.extui %44 : i1 to i32
    %c0_i32_21 = arith.constant 0 : i32
    %46 = arith.cmpi ne, %45, %c0_i32_21 : i32
    scf.if %46 {
      %c0_22 = arith.constant 0 : index
      %c0_23 = arith.constant 0 : index
      %47 = vector.load %arg5[%c0_22, %c0_23] : memref<8x1xf32, #tpu.memory_space<vmem>>, vector<8x1xf32>
      %c0_24 = arith.constant 0 : index
      %c0_25 = arith.constant 0 : index
      %48 = vector.load %arg6[%c0_24, %c0_25] : memref<8x1xf32, #tpu.memory_space<vmem>>, vector<8x1xf32>
      %49 = math.log %48 : vector<8x1xf32>
      %50 = arith.addf %47, %49 : vector<8x1xf32>
      %c0_26 = arith.constant 0 : index
      %c0_27 = arith.constant 0 : index
      %51 = vector.load %arg7[%c0_26, %c0_27] : memref<8x1xf32, #tpu.memory_space<vmem>>, vector<8x1xf32>
      %52 = arith.subf %50, %51 : vector<8x1xf32>
      %c0_28 = arith.constant 0 : index
      %c0_29 = arith.constant 0 : index
      %53 = vector.load %arg4[%c0_28, %c0_29] : memref<8x1xf32, #tpu.memory_space<vmem>>, vector<8x1xf32>
      tpu.vector_store %arg4[%c0_28, %c0_29], %52 {strides = array<i32>} : memref<8x1xf32, #tpu.memory_space<vmem>>, vector<8x1xf32>,
    } else {
    }
    return
  }
  func.func @transform_0(%arg0: i32, %arg1: i32) -> (i32, i32) {
    %c0_i32 = arith.constant 0 : i32
    %c0_i32_0 = arith.constant 0 : i32
    return %arg0, %c0_i32 : i32, i32
  }
  func.func @transform_1(%arg0: i32, %arg1: i32) -> (i32, i32) {
    %c0_i32 = arith.constant 0 : i32
    %c0_i32_0 = arith.constant 0 : i32
    return %arg1, %c0_i32 : i32, i32
  }
  func.func @transform_2(%arg0: i32, %arg1: i32) -> (i32, i32) {
    %c0_i32 = arith.constant 0 : i32
    %c0_i32_0 = arith.constant 0 : i32
    return %arg0, %c0_i32 : i32, i32
  }
}

</mosaic_0001>

<llo_original>
// kernel: tpu_custom_call.1
$region0: #{tpu_custom_call.1}
  #allocation0 [shape = 'u32[]', space=smem, size = 0x4, offset = 0x4, fixed_abs, tag = 'smem constant byte address 0x4 - core index']
  #allocation1 [shape = 'u32[144,128]{1,0:T(1,128)}', space=vmem, size = 0x12000, scoped, tag = 'internal scratch']
  #allocation2 [shape = 'f32[8,1]{1,0:T(8,128)}', space=vmem, size = 0x1000, scoped, tag = 'scratch operand']
  #allocation3 [shape = 'f32[8,1]{1,0:T(8,128)}', space=vmem, size = 0x1000, scoped, tag = 'scratch operand']
  #allocation4 [shape = 'f32[8,1]{1,0:T(8,128)}', space=vmem, size = 0x1000, scoped, tag = 'scratch operand']
  %s0 = inlined_call_operand.hbm [shape: f32[8,32], index: 0, kind: input, shape index: {}]
  %s1 = inlined_call_operand.hbm [shape: f32[8,32], index: 1, kind: input, shape index: {}]
  %s2 = inlined_call_operand.vmem [shape: f32[8,1], index: 2, kind: output, shape index: {}]
  %s3 = sld [smem:[#allocation0]]
  $region38: #{tpu_custom_call.1} parent=0
    _
  %s5 = ssub.s32 1, %s3
  %s6 = scalar_select 0, %s5, %s3
  $region1: #{tpu_custom_call.1} parent=0
    #allocation5 [shape = 'u8[4096]{0}', space=vmem, size = 0x1000, scoped, tag = 'input window, operand 0, single buffered']
    #allocation6 [shape = 's32[1]{0}', space=sflag, size = 0x4, scoped, tag = 'scoped memory for tpu_custom_call.1']
    #allocation7 [shape = 'u8[4096]{0}', space=vmem, size = 0x1000, scoped, tag = 'input window, operand 1, single buffered']
    #allocation8 [shape = 's32[1]{0}', space=sflag, size = 0x4, scoped, tag = 'scoped memory for tpu_custom_call.1']
    %7 = vsyncpa [#allocation6], 0
    %8 = vsyncpa [#allocation8], 0
    // Predicated region
    $region2: #{tpu_custom_call.1} parent=1 // pred_check
      _
    $region3: #{tpu_custom_call.1} parent=1 // pred_check_branch
      %10 = sbr.rel (0) target = $region5
    $region4: #{tpu_custom_call.1} parent=1 // pred_region
      %s12 = ssub.s32 128, 128
      %13 = vsyncadd [#allocation6], %s12
      %s15 = sshll.u32 [#allocation5], 4
      %s16 = int_to_ptr.vmem [resolvable:$true] %s15
      %18 = dma.hbm_to_vmem [thread:$0]  %s0, 128, %s16, [#allocation6]
    $region5: #{tpu_custom_call.1} parent=1 // pred_fallthru
      _
    // Predicated region
    $region6: #{tpu_custom_call.1} parent=1 // pred_check
      _
    $region7: #{tpu_custom_call.1} parent=1 // pred_check_branch
      %20 = sbr.rel (0) target = $region9
    $region8: #{tpu_custom_call.1} parent=1 // pred_region
      %s22 = ssub.s32 128, 128
      %23 = vsyncadd [#allocation8], %s22
      %s25 = sshll.u32 [#allocation7], 4
      %s26 = int_to_ptr.vmem [resolvable:$true] %s25
      %28 = dma.hbm_to_vmem [thread:$0]  %s1, 128, %s26, [#allocation8]
    $region9: #{tpu_custom_call.1} parent=1 // pred_fallthru
      _
    // Predicated region
    $region10: #{tpu_custom_call.1} parent=1 // pred_check
      _
    $region11: #{tpu_custom_call.1} parent=1 // pred_check_branch
      %30 = sbr.rel (0) target = $region13
    $region12: #{tpu_custom_call.1} parent=1 // pred_region
      %31 = dma.done [#allocation6], 128
    $region13: #{tpu_custom_call.1} parent=1 // pred_fallthru
      _
    // Predicated region
    $region14: #{tpu_custom_call.1} parent=1 // pred_check
      _
    $region15: #{tpu_custom_call.1} parent=1 // pred_check_branch
      %33 = sbr.rel (0) target = $region17
    $region16: #{tpu_custom_call.1} parent=1 // pred_region
      %34 = dma.done [#allocation8], 128
    $region17: #{tpu_custom_call.1} parent=1 // pred_fallthru
      _
    %p35 = scmp.eq.s32.totalorder 0, 0
    // Predicated region
    $region18: #{tpu_custom_call.1} parent=1 // pred_check
      %p36 = pneg %p35
    $region19: #{tpu_custom_call.1} parent=1 // pred_check_branch
      %38 = sbr.rel (%p36) target = $region21
    $region20: #{tpu_custom_call.1} parent=1 // pred_region
      %vm39 = vcmask 7168
      %40 = vst.msk [vmem:[#allocation2] sm:$0xff] %vm39, -inf
      %41 = vst.msk [vmem:[#allocation3] sm:$0xff] %vm39, 0.0
      %42 = vst.msk [vmem:[#allocation4] sm:$0xff] %vm39, 0.0
    $region21: #{tpu_custom_call.1} parent=1 // pred_fallthru
      _
    %v43 = vld [vmem:[#allocation5] sm:$0xff]
    %v44 = vld [vmem:[#allocation7] sm:$0xff]
    %v45 = vmul.f32 %v43, %v43
    %vm46 = vcmask 261120
    %v47 = vsel %vm46, %v45, 0.0
    %48 = vadd.xlane.f32.xlu0 %v47
    %v49 = vpop.xlane.xlu0 %48
    %v50 = vrsqrt.pop %v49
    %v51 = vmul.f32 %v49, %v50
    %vm52 = vcmp.eq.f32.partialorder %v49, inf
    %v53 = vsel %vm52, %v49, %v51
    %vm54 = vcmp.eq.f32.partialorder %v49, 0.0
    %v55 = vand.u32 %v49, 2147483648
    %v56 = vsel %vm54, %v55, %v53
    %v57 = vmax.f32 %v56, 1e-12
    %v58 = vrcp.pop %v57
    %v59 = vmul.f32 %v43, %v58
    %v60 = vmul.f32 %v44, %v44
    %v61 = vsel %vm46, %v60, 0.0
    %62 = vadd.xlane.f32.xlu0 %v61
    %v63 = vpop.xlane.xlu0 %62
    %v64 = vrsqrt.pop %v63
    %v65 = vmul.f32 %v63, %v64
    %vm66 = vcmp.eq.f32.partialorder %v63, inf
    %v67 = vsel %vm66, %v63, %v65
    %vm68 = vcmp.eq.f32.partialorder %v63, 0.0
    %v69 = vand.u32 %v63, 2147483648
    %v70 = vsel %vm68, %v69, %v67
    %v71 = vmax.f32 %v70, 1e-12
    %v72 = vrcp.pop %v71
    %v73 = vmul.f32 %v44, %v72
    %v75 = vsel %vm46, %v59, 0
    %v78 = vsel %vm46, %v73, 0
    %80 = vmatprep.subr.mxu0 0.0
    %81 = vmatpush1.xpose.msra.mxu0 0.0
    %82 = vmatprep.subr.mxu0 0.0
    %83 = vmatpush1.xpose.msra.mxu0 0.0
    %84 = vmatprep.subr.mxu0 0.0
    %85 = vmatpush1.xpose.msra.mxu0 0.0
    %86 = vmatprep.subr.mxu0 0.0
    %87 = vmatpush1.xpose.msra.mxu0 0.0
    %88 = vmatprep.subr.mxu0 0.0
    %89 = vmatpush1.xpose.msra.mxu0 0.0
    %90 = vmatprep.subr.mxu0 0.0
    %91 = vmatpush1.xpose.msra.mxu0 0.0
    %92 = vmatprep.subr.mxu0 0.0
    %93 = vmatpush1.xpose.msra.mxu0 0.0
    %94 = vmatprep.subr.mxu0 0.0
    %95 = vmatpush1.xpose.msra.mxu0 0.0
    %96 = vmatprep.subr.mxu0 0.0
    %97 = vmatpush1.xpose.msra.mxu0 0.0
    %98 = vmatprep.subr.mxu0 0.0
    %99 = vmatpush1.xpose.msra.mxu0 0.0
    %100 = vmatprep.subr.mxu0 0.0
    %101 = vmatpush1.xpose.msra.mxu0 0.0
    %102 = vmatprep.subr.mxu0 0.0
    %103 = vmatpush1.xpose.msra.mxu0 0.0
    %104 = vmatprep.subr.mxu0 0.0
    %105 = vmatpush1.xpose.msra.mxu0 0.0
    %106 = vmatprep.subr.mxu0 0.0
    %107 = vmatpush1.xpose.msra.mxu0 0.0
    %108 = vmatprep.subr.mxu0 0.0
    %109 = vmatpush1.xpose.msra.mxu0 0.0
    %110 = vmatprep.subr.mxu0 0.0
    %111 = vmatpush1.xpose.msra.mxu0 %v78
    %112 = vmatprep.subr.mxu0 0.0
    %113 = vmatpush2.xpose.msra.mxu0 0.0
    %114 = vmatprep.subr.mxu0 0.0
    %115 = vmatpush2.xpose.msra.mxu0 0.0
    %116 = vmatprep.subr.mxu0 0.0
    %117 = vmatpush2.xpose.msra.mxu0 0.0
    %118 = vmatprep.subr.mxu0 0.0
    %119 = vmatpush2.xpose.msra.mxu0 0.0
    %120 = vmatprep.subr.mxu0 0.0
    %121 = vmatpush2.xpose.msra.mxu0 0.0
    %122 = vmatprep.subr.mxu0 0.0
    %123 = vmatpush2.xpose.msra.mxu0 0.0
    %124 = vmatprep.subr.mxu0 0.0
    %125 = vmatpush2.xpose.msra.mxu0 0.0
    %126 = vmatprep.subr.mxu0 0.0
    %127 = vmatpush2.xpose.msra.mxu0 0.0
    %128 = vmatprep.subr.mxu0 0.0
    %129 = vmatpush2.xpose.msra.mxu0 0.0
    %130 = vmatprep.subr.mxu0 0.0
    %131 = vmatpush2.xpose.msra.mxu0 0.0
    %132 = vmatprep.subr.mxu0 0.0
    %133 = vmatpush2.xpose.msra.mxu0 0.0
    %134 = vmatprep.subr.mxu0 0.0
    %135 = vmatpush2.xpose.msra.mxu0 0.0
    %136 = vmatprep.subr.mxu0 0.0
    %137 = vmatpush2.xpose.msra.mxu0 0.0
    %138 = vmatprep.subr.mxu0 0.0
    %139 = vmatpush2.xpose.msra.mxu0 0.0
    %140 = vmatprep.subr.mxu0 0.0
    %141 = vmatpush2.xpose.msra.mxu0 0.0
    %142 = vmatprep.subr.mxu0 0.0
    %143 = vmatpush2.xpose.msra.mxu0 0.0
    %144 = vmatprep.mubr.f32.mxu0 0.0
    %145 = vmatmul.mubr.f32.gmra.mxu0 %v75
    %v146 = vpop.f32.mrf.mxu0
    %v147 = vadd.f32 0.0, %v146
    %v148 = vpop.f32.mrf.mxu0
    %149 = vdwg.mxu0
    %v150 = vmul.f32 %v147, 10.0
    %v151 = vld [vmem:[#allocation2] sm:$0xff]
    %vm152 = vcmask 64512
    %v153 = vsel %vm152, %v150, -inf
    %154 = vmax.xlane.f32.xlu0 %v153
    %v155 = vpop.xlane.xlu0 %154
    %v156 = vmax.f32 %v151, %v155
    %v157 = vld [vmem:[#allocation3] sm:$0xff]
    %v158 = vsub.f32 %v151, %v156
    %v159 = vmul.f32 %v158, 1.442695
    %v160 = vpow.pop %v159
    %v161 = vmul.f32 %v157, %v160
    %163 = vset.pattern.permute.xlu0 0
    %164 = vperm.xlu0 %163, %v156
    %v165 = vpop.permute.xlu0 %164
    %v167 = vsub.f32 %v150, %v165
    %v168 = vmul.f32 %v167, 1.442695
    %v169 = vpow.pop %v168
    %v170 = vsel %vm152, %v169, 0.0
    %171 = vadd.xlane.f32.xlu0 %v170
    %v172 = vpop.xlane.xlu0 %171
    %v173 = vadd.f32 %v161, %v172
    %vm174 = vcmask 7168
    %175 = vst.msk [vmem:[#allocation3] sm:$0xff] %vm174, %v173
    %176 = vst.msk [vmem:[#allocation2] sm:$0xff] %vm174, %v156
    %p177 = scmp.eq.s32.totalorder 0, 0
    // Predicated region
    $region22: #{tpu_custom_call.1} parent=1 // pred_check
      %p178 = pneg %p177
    $region23: #{tpu_custom_call.1} parent=1 // pred_check_branch
      %180 = sbr.rel (%p178) target = $region25
    $region24: #{tpu_custom_call.1} parent=1 // pred_region
      %v181 = vlaneseq
      %v182 = vshrl.u32 %v181, 7
      %v183 = vlaneseq
      %v184 = vand.u32 %v183, 127
      %vm185 = vcmp.eq.s32.totalorder %v182, %v184
      %v186 = vsel %vm185, %v150, 0.0
      %v187 = vsel %vm152, %v186, 0.0
      %188 = vadd.xlane.f32.xlu0 %v187
      %v189 = vpop.xlane.xlu0 %188
      %190 = vst.msk [vmem:[#allocation4] sm:$0xff] %vm174, %v189
    $region25: #{tpu_custom_call.1} parent=1 // pred_fallthru
      _
    // Predicated region
    $region26: #{tpu_custom_call.1} parent=1 // pred_check
      %p191 = pneg %p35
    $region27: #{tpu_custom_call.1} parent=1 // pred_check_branch
      %193 = sbr.rel (%p191) target = $region29
    $region28: #{tpu_custom_call.1} parent=1 // pred_region
      %v194 = vld [vmem:[#allocation2] sm:$0xff]
      %v195 = vld [vmem:[#allocation3] sm:$0xff]
      %v196 = vlog2.pop %v195
      %v197 = vmul.f32 %v196, 0.6931472
      %v198 = vadd.f32 %v194, %v197
      %v199 = vld [vmem:[#allocation4] sm:$0xff]
      %v200 = vsub.f32 %v198, %v199
      %201 = vst.msk [vmem:[%s2] sm:$0xff] %vm174, %v200
    $region29: #{tpu_custom_call.1} parent=1 // pred_fallthru
      _
    // Predicated region
    $region30: #{tpu_custom_call.1} parent=1 // pred_check
      _
    $region31: #{tpu_custom_call.1} parent=1 // pred_check_branch
      %203 = sbr.rel (0) target = $region33
    $region32: #{tpu_custom_call.1} parent=1 // pred_region
      _
    $region33: #{tpu_custom_call.1} parent=1 // pred_fallthru
      _
    // Predicated region
    $region34: #{tpu_custom_call.1} parent=1 // pred_check
      _
    $region35: #{tpu_custom_call.1} parent=1 // pred_check_branch
      %205 = sbr.rel (0) target = $region37
    $region36: #{tpu_custom_call.1} parent=1 // pred_region
      _
    $region37: #{tpu_custom_call.1} parent=1 // pred_fallthru
      _
    %206 = vsyncpa [#allocation6], 1
    %207 = vsyncpa [#allocation8], 1

</llo_original>
